<compile_context>
chip_gen: v6e
topology: v6e:2x2x1
jax: 0.10.0
libtpu: 0.0.40
codegen_flags: <defaults>
</compile_context>

<pallas_src>
import jax
import jax.numpy as jnp
from jax.experimental import pallas as pl
from jax.experimental.pallas import tpu as pltpu

IN_FEATURES = 64
OUT_FEATURES = 10

MAX_TB = 1024           # max batch tile (rows); 1024x64 f32 = 256 KiB per x buffer
SMALL_BATCH_BYPASS = 256  # below this, plain XLA dot wins (launch/step overhead)


def _round_up(x, m):
    return ((x + m - 1) // m) * m


def linear_kernel(x_ref, w_ref, b_ref, o_ref):
    # One batch tile: [TB, 64] @ [64, 10] on the MXU with f32 accumulation,
    # bias broadcast-add, store directly at the narrow (10-lane) output block.
    acc = jnp.dot(x_ref[...], w_ref[...], preferred_element_type=jnp.float32)
    o_ref[...] = (acc + b_ref[...]).astype(o_ref.dtype)


def prepare_params(w, b):
    """Convert PyTorch-layout params (w: [10, 64], b: [10]) for the kernel.

    Returns (w_t: [64, 10], b_2d: [1, 10]). No padding — done once, outside
    the per-call path.
    """
    return w.T, b.reshape(1, OUT_FEATURES)


def _choose_tb(B):
    # Multiple of 8 (sublane tile), capped at MAX_TB, and capped near ceil(B/2)
    # so there are >=2 grid steps to shard across v7x's two TensorCores.
    return max(8, min(MAX_TB, _round_up(pl.cdiv(B, 2), 8)))


def convnet2_forward(x, w_t, b_2d, *, force_pallas=False):
    """y = x @ W^T + b with x: [B, 64]; returns [B, 10]."""
    B = x.shape[0]

    # Tiny batches: the work is nanoseconds; skip the Pallas launch entirely.
    if not force_pallas and B < SMALL_BATCH_BYPASS:
        return x @ w_t + b_2d

    TB = _choose_tb(B)
    grid = (pl.cdiv(B, TB),)

    return pl.pallas_call(
        linear_kernel,
        out_shape=jax.ShapeDtypeStruct((B, OUT_FEATURES), x.dtype),
        grid_spec=pl.GridSpec(
            grid=grid,
            in_specs=[
                # x: tiled over batch only; last dim = full array dim (64).
                pl.BlockSpec((TB, IN_FEATURES), lambda i: (i, 0)),
                # weight / bias: constant block index -> VMEM-resident.
                pl.BlockSpec((IN_FEATURES, OUT_FEATURES), lambda i: (0, 0)),
                pl.BlockSpec((1, OUT_FEATURES), lambda i: (0, 0)),
            ],
            # Output emitted directly at N=10 (full array dim); OOB rows of a
            # ragged last block are dropped by Pallas.
            out_specs=pl.BlockSpec((TB, OUT_FEATURES), lambda i: (i, 0)),
        ),
        compiler_params=pltpu.CompilerParams(
            # Batch tiles are independent -> shard across TCs on v7x.
            dimension_semantics=("parallel",),
        ),
    )(x, w_t, b_2d)


def init_params(key):
    # Deterministic synthetic params mimicking nn.Linear(64, 10) init
    # (uniform in [-1/sqrt(64), 1/sqrt(64)]), in PyTorch layout.
    k_w, k_b = jax.random.split(key)
    bound = 1.0 / (IN_FEATURES ** 0.5)
    w = jax.random.uniform(
        k_w, (OUT_FEATURES, IN_FEATURES), jnp.float32, -bound, bound
    )
    b = jax.random.uniform(k_b, (OUT_FEATURES,), jnp.float32, -bound, bound)
    return w, b


if __name__ == "__main__":
    key = jax.random.PRNGKey(0)
    k_x1, k_x2, k_p = jax.random.split(key, 3)

    w, b = init_params(k_p)
    w_t, b_2d = prepare_params(w, b)

    # 1) Small batch, forced through the Pallas path (single grid step).
    B1 = 8
    x1 = jax.random.normal(k_x1, (B1, IN_FEATURES), jnp.float32)
    y1 = convnet2_forward(x1, w_t, b_2d, force_pallas=True)
    jax.block_until_ready(y1)
    ref1 = x1 @ w.T + b
    assert y1.shape == (B1, OUT_FEATURES)
    assert jnp.allclose(y1, ref1, atol=1e-5, rtol=1e-5)

    # 2) Multi-step grid with a ragged last block (2 steps, TB=104, B=200).
    B2 = 200
    x2 = jax.random.normal(k_x2, (B2, IN_FEATURES), jnp.float32)
    y2 = convnet2_forward(x2, w_t, b_2d, force_pallas=True)
    jax.block_until_ready(y2)
    ref2 = x2 @ w.T + b
    assert y2.shape == (B2, OUT_FEATURES)
    assert jnp.allclose(y2, ref2, atol=1e-5, rtol=1e-5)

    # 3) Tiny-batch bypass path (plain XLA dot).
    y3 = convnet2_forward(x1, w_t, b_2d)
    jax.block_until_ready(y3)
    assert jnp.allclose(y3, ref1, atol=1e-5, rtol=1e-5)

    print("KERNEL_OK")
</pallas_src>

<mosaic_0001>
module attributes {stable_mosaic.version = 11 : i64} {
  func.func @linear_kernel(%arg0: i32, %arg1: memref<8x64xf32, #tpu.memory_space<vmem>>, %arg2: memref<64x10xf32, #tpu.memory_space<vmem>>, %arg3: memref<1x10xf32, #tpu.memory_space<vmem>>, %arg4: memref<8x10xf32, #tpu.memory_space<vmem>>) attributes {dimension_semantics = [#tpu.dimension_semantics<parallel>], iteration_bounds = array<i64: 1>, scalar_prefetch = 0 : i64, scratch_operands = 0 : i64, tpu.core_type = #tpu.core_type<tc>, window_params = [{transform_indices = @transform_0, window_bounds = array<i64: 8, 64>}, {pipeline_mode = #tpu.pipeline_mode<synchronous>, transform_indices = @transform_1, window_bounds = array<i64: 64, 10>}, {pipeline_mode = #tpu.pipeline_mode<synchronous>, transform_indices = @transform_2, window_bounds = array<i64: 1, 10>}, {transform_indices = @transform_3, window_bounds = array<i64: 8, 10>}]} {
    %c0 = arith.constant 0 : index
    %c0_0 = arith.constant 0 : index
    %0 = vector.load %arg1[%c0, %c0_0] : memref<8x64xf32, #tpu.memory_space<vmem>>, vector<8x64xf32>
    %c0_1 = arith.constant 0 : index
    %c0_2 = arith.constant 0 : index
    %1 = vector.load %arg2[%c0_1, %c0_2] : memref<64x10xf32, #tpu.memory_space<vmem>>, vector<64x10xf32>
    %cst = arith.constant dense<0.000000e+00> : vector<8x10xf32>
    %2 = tpu.matmul %0, %1, %cst {dimension_numbers = #tpu.dot_dimension_numbers<[1], [0], [0], [1], [0, 0, 1, 1], [], []>} : vector<8x64xf32>, vector<64x10xf32>, vector<8x10xf32> -> vector<8x10xf32>
    %c0_3 = arith.constant 0 : index
    %c0_4 = arith.constant 0 : index
    %3 = vector.load %arg3[%c0_3, %c0_4] : memref<1x10xf32, #tpu.memory_space<vmem>>, vector<1x10xf32>
    %4 = vector.broadcast %3 : vector<1x10xf32> to vector<8x10xf32>
    %5 = arith.addf %2, %4 : vector<8x10xf32>
    %c0_5 = arith.constant 0 : index
    %c0_6 = arith.constant 0 : index
    %6 = vector.load %arg4[%c0_5, %c0_6] : memref<8x10xf32, #tpu.memory_space<vmem>>, vector<8x10xf32>
    tpu.vector_store %arg4[%c0_5, %c0_6], %5 {strides = array<i32>} : memref<8x10xf32, #tpu.memory_space<vmem>>, vector<8x10xf32>,
    return
  }
  func.func @transform_0(%arg0: i32) -> (i32, i32) {
    %c0_i32 = arith.constant 0 : i32
    %c0_i32_0 = arith.constant 0 : i32
    return %arg0, %c0_i32 : i32, i32
  }
  func.func @transform_1(%arg0: i32) -> (i32, i32) {
    %c0_i32 = arith.constant 0 : i32
    %c0_i32_0 = arith.constant 0 : i32
    %c0_i32_1 = arith.constant 0 : i32
    return %c0_i32, %c0_i32_0 : i32, i32
  }
  func.func @transform_2(%arg0: i32) -> (i32, i32) {
    %c0_i32 = arith.constant 0 : i32
    %c0_i32_0 = arith.constant 0 : i32
    %c0_i32_1 = arith.constant 0 : i32
    return %c0_i32, %c0_i32_0 : i32, i32
  }
  func.func @transform_3(%arg0: i32) -> (i32, i32) {
    %c0_i32 = arith.constant 0 : i32
    %c0_i32_0 = arith.constant 0 : i32
    return %arg0, %c0_i32 : i32, i32
  }
}

</mosaic_0001>

<llo_original>
// kernel: tpu_custom_call.1
$region0: #{tpu_custom_call.1}
  #allocation0 [shape = 'u32[]', space=smem, size = 0x4, offset = 0x4, fixed_abs, tag = 'smem constant byte address 0x4 - core index']
  #allocation1 [shape = 'u32[144,128]{1,0:T(1,128)}', space=vmem, size = 0x12000, scoped, tag = 'internal scratch']
  %s0 = inlined_call_operand.vmem [shape: f32[8,64], index: 0, kind: input, shape index: {}]
  %s1 = inlined_call_operand.vmem [shape: f32[64,10], index: 1, kind: input, shape index: {}]
  %s2 = inlined_call_operand.vmem [shape: f32[1,10], index: 2, kind: input, shape index: {}]
  %s3 = inlined_call_operand.hbm [shape: f32[8,10], index: 3, kind: output, shape index: {}]
  %s4 = sld [smem:[#allocation0]]
  $region22: #{tpu_custom_call.1} parent=0
    _
  %s6 = ssub.s32 1, %s4
  %s7 = scalar_select 0, %s6, %s4
  $region1: #{tpu_custom_call.1} parent=0
    #allocation2 [shape = 'u8[4096]{0}', space=vmem, size = 0x1000, scoped, tag = 'output window, operand 0, single buffered']
    #allocation3 [shape = 's32[1]{0}', space=sflag, size = 0x4, scoped, tag = 'scoped memory for tpu_custom_call.1']
    %8 = vsyncpa [#allocation3], 0
    // Predicated region
    $region2: #{tpu_custom_call.1} parent=1 // pred_check
      _
    $region3: #{tpu_custom_call.1} parent=1 // pred_check_branch
      %10 = sbr.rel (0) target = $region5
    $region4: #{tpu_custom_call.1} parent=1 // pred_region
      _
    $region5: #{tpu_custom_call.1} parent=1 // pred_fallthru
      _
    // Predicated region
    $region6: #{tpu_custom_call.1} parent=1 // pred_check
      _
    $region7: #{tpu_custom_call.1} parent=1 // pred_check_branch
      %12 = sbr.rel (0) target = $region9
    $region8: #{tpu_custom_call.1} parent=1 // pred_region
      _
    $region9: #{tpu_custom_call.1} parent=1 // pred_fallthru
      _
    // Predicated region
    $region10: #{tpu_custom_call.1} parent=1 // pred_check
      _
    $region11: #{tpu_custom_call.1} parent=1 // pred_check_branch
      %14 = sbr.rel (0) target = $region13
    $region12: #{tpu_custom_call.1} parent=1 // pred_region
      _
    $region13: #{tpu_custom_call.1} parent=1 // pred_fallthru
      _
    %v15 = vld [vmem:[%s0] sm:$0xff]
    %v16 = vld [vmem:[%s1] sm:$0xff]
    %v17 = vld [vmem:[%s1 + $0x8] sm:$0xff]
    %v18 = vld [vmem:[%s1 + $0x10] sm:$0xff]
    %v19 = vld [vmem:[%s1 + $0x18] sm:$0xff]
    %v20 = vld [vmem:[%s1 + $0x20] sm:$0xff]
    %v21 = vld [vmem:[%s1 + $0x28] sm:$0xff]
    %v22 = vld [vmem:[%s1 + $0x30] sm:$0xff]
    %v23 = vld [vmem:[%s1 + $0x38] sm:$0xff]
    %v24 = vld [vmem:[%s2] sm:$0x1]
    %v26 = vlaneseq
    %v27 = vshrl.u32 %v26, 7
    %v28 = vsub.s32 0, %v27
    %v29 = vrot.slane %v24, %v28
    %vm31 = vcmask 523264
    %v33 = vsel %vm31, %v15, 0
    %35 = vmatprep.subr.mxu0 0.0
    %36 = vmatpush1.msra.mxu0 0.0
    %37 = vmatprep.subr.mxu0 0.0
    %38 = vmatpush1.msra.mxu0 0.0
    %39 = vmatprep.subr.mxu0 0.0
    %40 = vmatpush1.msra.mxu0 0.0
    %41 = vmatprep.subr.mxu0 0.0
    %42 = vmatpush1.msra.mxu0 0.0
    %43 = vmatprep.subr.mxu0 0.0
    %44 = vmatpush1.msra.mxu0 0.0
    %45 = vmatprep.subr.mxu0 0.0
    %46 = vmatpush1.msra.mxu0 0.0
    %47 = vmatprep.subr.mxu0 0.0
    %48 = vmatpush1.msra.mxu0 0.0
    %49 = vmatprep.subr.mxu0 0.0
    %50 = vmatpush1.msra.mxu0 0.0
    %51 = vmatprep.subr.mxu0 0.0
    %52 = vmatpush1.msra.mxu0 %v23
    %53 = vmatprep.subr.mxu0 0.0
    %54 = vmatpush1.msra.mxu0 %v22
    %55 = vmatprep.subr.mxu0 0.0
    %56 = vmatpush1.msra.mxu0 %v21
    %57 = vmatprep.subr.mxu0 0.0
    %58 = vmatpush1.msra.mxu0 %v20
    %59 = vmatprep.subr.mxu0 0.0
    %60 = vmatpush1.msra.mxu0 %v19
    %61 = vmatprep.subr.mxu0 0.0
    %62 = vmatpush1.msra.mxu0 %v18
    %63 = vmatprep.subr.mxu0 0.0
    %64 = vmatpush1.msra.mxu0 %v17
    %65 = vmatprep.subr.mxu0 0.0
    %66 = vmatpush1.msra.mxu0 %v16
    %67 = vmatprep.subr.mxu0 0.0
    %68 = vmatpush2.msra.mxu0 0.0
    %69 = vmatprep.subr.mxu0 0.0
    %70 = vmatpush2.msra.mxu0 0.0
    %71 = vmatprep.subr.mxu0 0.0
    %72 = vmatpush2.msra.mxu0 0.0
    %73 = vmatprep.subr.mxu0 0.0
    %74 = vmatpush2.msra.mxu0 0.0
    %75 = vmatprep.subr.mxu0 0.0
    %76 = vmatpush2.msra.mxu0 0.0
    %77 = vmatprep.subr.mxu0 0.0
    %78 = vmatpush2.msra.mxu0 0.0
    %79 = vmatprep.subr.mxu0 0.0
    %80 = vmatpush2.msra.mxu0 0.0
    %81 = vmatprep.subr.mxu0 0.0
    %82 = vmatpush2.msra.mxu0 0.0
    %83 = vmatprep.subr.mxu0 0.0
    %84 = vmatpush2.msra.mxu0 0.0
    %85 = vmatprep.subr.mxu0 0.0
    %86 = vmatpush2.msra.mxu0 0.0
    %87 = vmatprep.subr.mxu0 0.0
    %88 = vmatpush2.msra.mxu0 0.0
    %89 = vmatprep.subr.mxu0 0.0
    %90 = vmatpush2.msra.mxu0 0.0
    %91 = vmatprep.subr.mxu0 0.0
    %92 = vmatpush2.msra.mxu0 0.0
    %93 = vmatprep.subr.mxu0 0.0
    %94 = vmatpush2.msra.mxu0 0.0
    %95 = vmatprep.subr.mxu0 0.0
    %96 = vmatpush2.msra.mxu0 0.0
    %97 = vmatprep.subr.mxu0 0.0
    %98 = vmatpush2.msra.mxu0 0.0
    %99 = vmatprep.mubr.f32.mxu0 0.0
    %100 = vmatmul.mubr.f32.gmra.mxu0 %v33
    %v101 = vpop.f32.mrf.mxu0
    %v102 = vadd.f32 %v29, %v101
    %v103 = vpop.f32.mrf.mxu0
    %104 = vdwg.mxu0
    %vm105 = vcmask 80896
    %106 = vst.msk [vmem:[#allocation2] sm:$0xff] %vm105, %v102
    // Predicated region
    $region14: #{tpu_custom_call.1} parent=1 // pred_check
      _
    $region15: #{tpu_custom_call.1} parent=1 // pred_check_branch
      %108 = sbr.rel (0) target = $region17
    $region16: #{tpu_custom_call.1} parent=1 // pred_region
      %s110 = ssub.s32 128, 128
      %111 = vsyncadd [#allocation3], %s110
      %s113 = sshll.u32 [#allocation2], 4
      %s114 = int_to_ptr.vmem [resolvable:$true] %s113
      %116 = dma.vmem_to_hbm [thread:$0]  %s114, 128, %s3, [#allocation3]
    $region17: #{tpu_custom_call.1} parent=1 // pred_fallthru
      _
    // Predicated region
    $region18: #{tpu_custom_call.1} parent=1 // pred_check
      _
    $region19: #{tpu_custom_call.1} parent=1 // pred_check_branch
      %118 = sbr.rel (0) target = $region21
    $region20: #{tpu_custom_call.1} parent=1 // pred_region
      %119 = dma.done [#allocation3], 128
    $region21: #{tpu_custom_call.1} parent=1 // pred_fallthru
      _
    %120 = vsyncpa [#allocation3], 1

</llo_original>
